<compile_context>
chip_gen: v6e
topology: v6e:2x2x1
jax: 0.10.0
libtpu: 0.0.40
codegen_flags: <defaults>
</compile_context>

<pallas_src>
import functools

import jax
import jax.numpy as jnp
from jax.experimental import pallas as pl
from jax.experimental.pallas import tpu as pltpu

GAMMA = 1.0          # FocalLoss(gamma=1.0)
NUM_CLASSES = 80     # FocalLoss(num_classes=80) -> logits have 80 + 1 columns


def _round_up(x, m):
    return ((x + m - 1) // m) * m


def _focal_loss_kernel(x_ref, t_ref, out_ref, *, gamma, n_valid, tile_n):
    i = pl.program_id(0)

    x = x_ref[...].astype(jnp.float32)          # (TN, C) logits tile
    t = t_ref[...]                              # (TN, 1) int32 targets

    # Numerically-stable softmax pieces; exp(x - m) is computed once and reused.
    m = jnp.max(x, axis=-1, keepdims=True)      # (TN, 1)   XLU
    xm = x - m                                  # (TN, C)   VPU
    e = jnp.exp(xm)                             # (TN, C)   EUP (dominant cost)

    cls_ids = jax.lax.broadcasted_iota(jnp.int32, x.shape, 1)   # (TN, C)
    is_tgt = cls_ids == t                                       # (TN, C) bool

    sum_e = jnp.sum(e, axis=-1, keepdims=True)                                  # (TN, 1)
    tgt_e = jnp.sum(jnp.where(is_tgt, e, 0.0), axis=-1, keepdims=True)          # (TN, 1)
    tgt_shift = jnp.sum(jnp.where(is_tgt, xm, 0.0), axis=-1, keepdims=True)     # x[t] - m

    # ce = logsumexp(x) - x[target], clamped >= 0 against rounding.
    ce = jnp.maximum(jnp.log(sum_e) - tgt_shift, 0.0)           # (TN, 1)
    # p = softmax(x)[target] = exp(-ce), computed without an extra exp.
    p = tgt_e * pl.reciprocal(sum_e, approx=True)               # (TN, 1)
    omp = jnp.maximum(1.0 - p, 0.0)

    # Focal modulation (1 - p)**gamma, specialized at trace time.
    if float(gamma) == 0.0:
        mod = jnp.ones_like(omp)
    elif float(gamma).is_integer():
        mod = omp
        for _ in range(int(gamma) - 1):
            mod = mod * omp
    else:
        mod = jnp.power(omp, gamma)             # non-integer gamma fallback

    loss = mod * ce                             # (TN, 1)

    # Zero-out rows beyond the true N (wrapper pads N up to a tile multiple).
    row_ids = i * tile_n + jax.lax.broadcasted_iota(jnp.int32, loss.shape, 0)
    loss = jnp.where(row_ids < n_valid, loss, 0.0)

    # Independent per-tile partial sum -> parallel-safe across the grid.
    out_ref[0, 0] = jnp.sum(loss)


def focal_loss(logits, targets, *, gamma=GAMMA, tile_n=2048):
    """logits: (N, C) float (f32 or bf16); targets: (N,) int. Returns scalar float32."""
    n, c = logits.shape

    # Tile size: multiple of 8, no larger than the (rounded-up) row count.
    tile_n = max(8, _round_up(min(tile_n, _round_up(n, 8)), 8))
    n_pad = _round_up(n, tile_n)
    if n_pad != n:
        logits = jnp.pad(logits, ((0, n_pad - n), (0, 0)))
        targets = jnp.pad(targets, (0, n_pad - n))
    targets2d = targets.astype(jnp.int32).reshape(n_pad, 1)
    num_tiles = n_pad // tile_n

    partials = pl.pallas_call(
        functools.partial(_focal_loss_kernel, gamma=gamma, n_valid=n, tile_n=tile_n),
        out_shape=jax.ShapeDtypeStruct((num_tiles, 1), jnp.float32),
        grid_spec=pltpu.PrefetchScalarGridSpec(
            num_scalar_prefetch=0,
            grid=(num_tiles,),
            in_specs=[
                pl.BlockSpec((tile_n, c), lambda i: (i, 0)),
                pl.BlockSpec((tile_n, 1), lambda i: (i, 0)),
            ],
            out_specs=pl.BlockSpec(
                (1, 1), lambda i: (i, 0), memory_space=pltpu.SMEM
            ),
        ),
        compiler_params=pltpu.CompilerParams(
            dimension_semantics=("parallel",),   # per-tile partials are independent
        ),
    )(logits, targets2d)
    return jnp.sum(partials)


def focal_loss_ref(logits, targets, gamma=GAMMA):
    """Pure-JAX reference matching torch F.cross_entropy + focal modulation."""
    logits = logits.astype(jnp.float32)
    lse = jax.nn.logsumexp(logits, axis=-1)
    tgt = jnp.take_along_axis(logits, targets[:, None].astype(jnp.int32), axis=-1)[:, 0]
    ce = lse - tgt
    p = jnp.exp(-ce)
    return jnp.sum((1.0 - p) ** gamma * ce)


if __name__ == "__main__":
    key = jax.random.PRNGKey(0)
    k1, k2, k3, k4 = jax.random.split(key, 4)

    C = NUM_CLASSES + 1          # 80 foreground classes + background

    # Case 1: small, tile-aligned batch of proposals.
    n1 = 64
    logits1 = jax.random.normal(k1, (n1, C), dtype=jnp.float32)
    targets1 = jax.random.randint(k2, (n1,), 0, C, dtype=jnp.int32)
    out1 = jax.block_until_ready(focal_loss(logits1, targets1))
    ref1 = focal_loss_ref(logits1, targets1)
    assert jnp.allclose(out1, ref1, rtol=2e-3, atol=1e-2), (out1, ref1)

    # Case 2: N not a multiple of the tile -> exercises padding/masking + multi-tile grid.
    n2 = 200
    logits2 = jax.random.normal(k3, (n2, C), dtype=jnp.float32)
    targets2 = jax.random.randint(k4, (n2,), 0, C, dtype=jnp.int32)
    out2 = jax.block_until_ready(focal_loss(logits2, targets2, tile_n=64))
    ref2 = focal_loss_ref(logits2, targets2)
    assert jnp.allclose(out2, ref2, rtol=2e-3, atol=1e-2), (out2, ref2)

    print("KERNEL_OK")
</pallas_src>

<mosaic_0001>
module attributes {stable_mosaic.version = 11 : i64} {
  func.func @_focal_loss_kernel(%arg0: i32, %arg1: memref<64x81xf32, #tpu.memory_space<vmem>>, %arg2: memref<64x1xi32, #tpu.memory_space<vmem>>, %arg3: memref<1x1xf32, #tpu.memory_space<smem>>) attributes {dimension_semantics = [#tpu.dimension_semantics<parallel>], iteration_bounds = array<i64: 1>, scalar_prefetch = 0 : i64, scratch_operands = 0 : i64, tpu.core_type = #tpu.core_type<tc>, window_params = [{transform_indices = @transform_0, window_bounds = array<i64: 64, 81>}, {transform_indices = @transform_1, window_bounds = array<i64: 64, 1>}, {transform_indices = @transform_2, window_bounds = array<i64: 1, 1>}]} {
    %c0 = arith.constant 0 : index
    %c0_0 = arith.constant 0 : index
    %0 = vector.load %arg1[%c0, %c0_0] : memref<64x81xf32, #tpu.memory_space<vmem>>, vector<64x81xf32>
    %c0_1 = arith.constant 0 : index
    %c0_2 = arith.constant 0 : index
    %1 = vector.load %arg2[%c0_1, %c0_2] : memref<64x1xi32, #tpu.memory_space<vmem>>, vector<64x1xi32>
    %cst = arith.constant dense<0xFF800000> : vector<64xf32>
    %2 = vector.multi_reduction <maximumf>, %0, %cst [1] : vector<64x81xf32> to vector<64xf32>
    %3 = vector.shape_cast %2 : vector<64xf32> to vector<64x1xf32>
    %4 = vector.broadcast %3 : vector<64x1xf32> to vector<64x81xf32>
    %5 = arith.subf %0, %4 : vector<64x81xf32>
    %6 = math.exp %5 : vector<64x81xf32>
    %7 = tpu.iota {dimensions = array<i32: 1>} : vector<64x81xi32>
    %8 = vector.broadcast %1 : vector<64x1xi32> to vector<64x81xi32>
    %9 = arith.cmpi eq, %7, %8 : vector<64x81xi32>
    %cst_3 = arith.constant dense<0.000000e+00> : vector<64xf32>
    %10 = vector.multi_reduction <add>, %6, %cst_3 [1] : vector<64x81xf32> to vector<64xf32>
    %11 = vector.shape_cast %10 : vector<64xf32> to vector<64x1xf32>
    %cst_4 = arith.constant 0.000000e+00 : f32
    %12 = vector.broadcast %cst_4 : f32 to vector<64x81xf32>
    %13 = arith.select %9, %6, %12 : vector<64x81xi1>, vector<64x81xf32>
    %cst_5 = arith.constant dense<0.000000e+00> : vector<64xf32>
    %14 = vector.multi_reduction <add>, %13, %cst_5 [1] : vector<64x81xf32> to vector<64xf32>
    %15 = vector.shape_cast %14 : vector<64xf32> to vector<64x1xf32>
    %cst_6 = arith.constant 0.000000e+00 : f32
    %16 = vector.broadcast %cst_6 : f32 to vector<64x81xf32>
    %17 = arith.select %9, %5, %16 : vector<64x81xi1>, vector<64x81xf32>
    %cst_7 = arith.constant dense<0.000000e+00> : vector<64xf32>
    %18 = vector.multi_reduction <add>, %17, %cst_7 [1] : vector<64x81xf32> to vector<64xf32>
    %19 = vector.shape_cast %18 : vector<64xf32> to vector<64x1xf32>
    %20 = math.log %11 : vector<64x1xf32>
    %21 = arith.subf %20, %19 : vector<64x1xf32>
    %cst_8 = arith.constant 0.000000e+00 : f32
    %22 = vector.broadcast %cst_8 : f32 to vector<64x1xf32>
    %23 = arith.maximumf %21, %22 : vector<64x1xf32>
    %24 = tpu.reciprocal %11 {approx = true} : vector<64x1xf32> -> vector<64x1xf32>
    %25 = arith.mulf %15, %24 : vector<64x1xf32>
    %cst_9 = arith.constant 1.000000e+00 : f32
    %26 = vector.broadcast %cst_9 : f32 to vector<64x1xf32>
    %27 = arith.subf %26, %25 : vector<64x1xf32>
    %cst_10 = arith.constant 0.000000e+00 : f32
    %28 = vector.broadcast %cst_10 : f32 to vector<64x1xf32>
    %29 = arith.maximumf %27, %28 : vector<64x1xf32>
    %30 = arith.mulf %29, %23 : vector<64x1xf32>
    %c64_i32 = arith.constant 64 : i32
    %31 = arith.muli %arg0, %c64_i32 : i32
    %32 = tpu.iota {dimensions = array<i32: 0>} : vector<64x1xi32>
    %33 = vector.broadcast %31 : i32 to vector<64x1xi32>
    %34 = arith.addi %33, %32 : vector<64x1xi32>
    %c64_i32_11 = arith.constant 64 : i32
    %35 = vector.broadcast %c64_i32_11 : i32 to vector<64x1xi32>
    %36 = arith.cmpi slt, %34, %35 : vector<64x1xi32>
    %cst_12 = arith.constant 0.000000e+00 : f32
    %37 = vector.broadcast %cst_12 : f32 to vector<64x1xf32>
    %38 = arith.select %36, %30, %37 : vector<64x1xi1>, vector<64x1xf32>
    %39 = vector.shape_cast %38 : vector<64x1xf32> to vector<1x64x1xf32>
    %cst_13 = arith.constant dense<0.000000e+00> : vector<1xf32>
    %40 = vector.multi_reduction <add>, %39, %cst_13 [1, 2] : vector<1x64x1xf32> to vector<1xf32>
    %41 = vector.shape_cast %40 : vector<1xf32> to vector<1x1x1xf32>
    %42 = vector.extract %41[0, 0, 0] : f32 from vector<1x1x1xf32>
    %c0_14 = arith.constant 0 : index
    %c0_15 = arith.constant 0 : index
    %43 = memref.load %arg3[%c0_14, %c0_15] : memref<1x1xf32, #tpu.memory_space<smem>>
    memref.store %42, %arg3[%c0_14, %c0_15] : memref<1x1xf32, #tpu.memory_space<smem>>
    return
  }
  func.func @transform_0(%arg0: i32) -> (i32, i32) {
    %c0_i32 = arith.constant 0 : i32
    %c0_i32_0 = arith.constant 0 : i32
    return %arg0, %c0_i32 : i32, i32
  }
  func.func @transform_1(%arg0: i32) -> (i32, i32) {
    %c0_i32 = arith.constant 0 : i32
    %c0_i32_0 = arith.constant 0 : i32
    return %arg0, %c0_i32 : i32, i32
  }
  func.func @transform_2(%arg0: i32) -> (i32, i32) {
    %c0_i32 = arith.constant 0 : i32
    %c0_i32_0 = arith.constant 0 : i32
    return %arg0, %c0_i32 : i32, i32
  }
}

</mosaic_0001>

<llo_original>
// kernel: tpu_custom_call.1
$region0: #{tpu_custom_call.1}
  #allocation0 [shape = 'u32[]', space=smem, size = 0x4, offset = 0x4, fixed_abs, tag = 'smem constant byte address 0x4 - core index']
  #allocation1 [shape = 'u32[144,128]{1,0:T(1,128)}', space=vmem, size = 0x12000, scoped, tag = 'internal scratch']
  %s0 = inlined_call_operand.vmem [shape: f32[64,81], index: 0, kind: input, shape index: {}]
  %s1 = inlined_call_operand.vmem [shape: s32[64,1], index: 1, kind: input, shape index: {}]
  %s2 = inlined_call_operand.hbm [shape: f32[1,1], index: 2, kind: output, shape index: {}]
  %s3 = sld [smem:[#allocation0]]
  $region18: #{tpu_custom_call.1} parent=0
    _
  %s5 = ssub.s32 1, %s3
  %s6 = scalar_select 0, %s5, %s3
  $region1: #{tpu_custom_call.1} parent=0
    #allocation2 [shape = 'u8[512]{0}', space=smem, size = 0x200, scoped, tag = 'output window, operand 0, single buffered']
    #allocation3 [shape = 's32[1]{0}', space=sflag, size = 0x4, scoped, tag = 'scoped memory for tpu_custom_call.1']
    %7 = vsyncpa [#allocation3], 0
    // Predicated region
    $region2: #{tpu_custom_call.1} parent=1 // pred_check
      _
    $region3: #{tpu_custom_call.1} parent=1 // pred_check_branch
      %9 = sbr.rel (0) target = $region5
    $region4: #{tpu_custom_call.1} parent=1 // pred_region
      _
    $region5: #{tpu_custom_call.1} parent=1 // pred_fallthru
      _
    // Predicated region
    $region6: #{tpu_custom_call.1} parent=1 // pred_check
      _
    $region7: #{tpu_custom_call.1} parent=1 // pred_check_branch
      %11 = sbr.rel (0) target = $region9
    $region8: #{tpu_custom_call.1} parent=1 // pred_region
      _
    $region9: #{tpu_custom_call.1} parent=1 // pred_fallthru
      _
    %v12 = vld [vmem:[%s0] sm:$0xff]
    %v13 = vld [vmem:[%s0 + $0x8] sm:$0xff]
    %v14 = vld [vmem:[%s0 + $0x10] sm:$0xff]
    %v15 = vld [vmem:[%s0 + $0x18] sm:$0xff]
    %v16 = vld [vmem:[%s0 + $0x20] sm:$0xff]
    %v17 = vld [vmem:[%s0 + $0x28] sm:$0xff]
    %v18 = vld [vmem:[%s0 + $0x30] sm:$0xff]
    %v19 = vld [vmem:[%s0 + $0x38] sm:$0xff]
    %v20 = vld [vmem:[%s1] sm:$0xff]
    %v21 = vld [vmem:[%s1 + $0x8] sm:$0xff]
    %v22 = vld [vmem:[%s1 + $0x10] sm:$0xff]
    %v23 = vld [vmem:[%s1 + $0x18] sm:$0xff]
    %v24 = vld [vmem:[%s1 + $0x20] sm:$0xff]
    %v25 = vld [vmem:[%s1 + $0x28] sm:$0xff]
    %v26 = vld [vmem:[%s1 + $0x30] sm:$0xff]
    %v27 = vld [vmem:[%s1 + $0x38] sm:$0xff]
    %vm28 = vcmask 662528
    %v29 = vsel %vm28, %v12, -inf
    %30 = vmax.xlane.f32.xlu0 %v29
    %v31 = vpop.xlane.xlu0 %30
    %v32 = vsel %vm28, %v13, -inf
    %33 = vmax.xlane.f32.xlu0 %v32
    %v34 = vpop.xlane.xlu0 %33
    %v35 = vsel %vm28, %v14, -inf
    %36 = vmax.xlane.f32.xlu0 %v35
    %v37 = vpop.xlane.xlu0 %36
    %v38 = vsel %vm28, %v15, -inf
    %39 = vmax.xlane.f32.xlu0 %v38
    %v40 = vpop.xlane.xlu0 %39
    %v41 = vsel %vm28, %v16, -inf
    %42 = vmax.xlane.f32.xlu0 %v41
    %v43 = vpop.xlane.xlu0 %42
    %v44 = vsel %vm28, %v17, -inf
    %45 = vmax.xlane.f32.xlu0 %v44
    %v46 = vpop.xlane.xlu0 %45
    %v47 = vsel %vm28, %v18, -inf
    %48 = vmax.xlane.f32.xlu0 %v47
    %v49 = vpop.xlane.xlu0 %48
    %v50 = vsel %vm28, %v19, -inf
    %51 = vmax.xlane.f32.xlu0 %v50
    %v52 = vpop.xlane.xlu0 %51
    %v53 = vsub.f32 %v12, %v31
    %v54 = vsub.f32 %v13, %v34
    %v55 = vsub.f32 %v14, %v37
    %v56 = vsub.f32 %v15, %v40
    %v57 = vsub.f32 %v16, %v43
    %v58 = vsub.f32 %v17, %v46
    %v59 = vsub.f32 %v18, %v49
    %v60 = vsub.f32 %v19, %v52
    %v61 = vmul.f32 %v53, 1.442695
    %v62 = vpow.pop %v61
    %v63 = vmul.f32 %v54, 1.442695
    %v64 = vpow.pop %v63
    %v65 = vmul.f32 %v55, 1.442695
    %v66 = vpow.pop %v65
    %v67 = vmul.f32 %v56, 1.442695
    %v68 = vpow.pop %v67
    %v69 = vmul.f32 %v57, 1.442695
    %v70 = vpow.pop %v69
    %v71 = vmul.f32 %v58, 1.442695
    %v72 = vpow.pop %v71
    %v73 = vmul.f32 %v59, 1.442695
    %v74 = vpow.pop %v73
    %v75 = vmul.f32 %v60, 1.442695
    %v76 = vpow.pop %v75
    %v77 = vlaneseq
    %v78 = vand.u32 %v77, 127
    %79 = vset.pattern.permute.xlu0 0
    %80 = vperm.xlu0 %79, %v20
    %v81 = vpop.permute.xlu0 %80
    %82 = vset.pattern.permute.xlu0 0
    %83 = vperm.xlu0 %82, %v21
    %v84 = vpop.permute.xlu0 %83
    %85 = vset.pattern.permute.xlu0 0
    %86 = vperm.xlu0 %85, %v22
    %v87 = vpop.permute.xlu0 %86
    %88 = vset.pattern.permute.xlu0 0
    %89 = vperm.xlu0 %88, %v23
    %v90 = vpop.permute.xlu0 %89
    %91 = vset.pattern.permute.xlu0 0
    %92 = vperm.xlu0 %91, %v24
    %v93 = vpop.permute.xlu0 %92
    %94 = vset.pattern.permute.xlu0 0
    %95 = vperm.xlu0 %94, %v25
    %v96 = vpop.permute.xlu0 %95
    %97 = vset.pattern.permute.xlu0 0
    %98 = vperm.xlu0 %97, %v26
    %v99 = vpop.permute.xlu0 %98
    %100 = vset.pattern.permute.xlu0 0
    %101 = vperm.xlu0 %100, %v27
    %v102 = vpop.permute.xlu0 %101
    %vm103 = vcmp.eq.s32.totalorder %v78, %v81
    %vm104 = vcmp.eq.s32.totalorder %v78, %v84
    %vm105 = vcmp.eq.s32.totalorder %v78, %v87
    %vm106 = vcmp.eq.s32.totalorder %v78, %v90
    %vm107 = vcmp.eq.s32.totalorder %v78, %v93
    %vm108 = vcmp.eq.s32.totalorder %v78, %v96
    %vm109 = vcmp.eq.s32.totalorder %v78, %v99
    %vm110 = vcmp.eq.s32.totalorder %v78, %v102
    %v111 = vsel %vm28, %v62, 0.0
    %112 = vadd.xlane.f32.xlu0 %v111
    %v113 = vpop.xlane.xlu0 %112
    %v114 = vsel %vm28, %v64, 0.0
    %115 = vadd.xlane.f32.xlu0 %v114
    %v116 = vpop.xlane.xlu0 %115
    %v117 = vsel %vm28, %v66, 0.0
    %118 = vadd.xlane.f32.xlu0 %v117
    %v119 = vpop.xlane.xlu0 %118
    %v120 = vsel %vm28, %v68, 0.0
    %121 = vadd.xlane.f32.xlu0 %v120
    %v122 = vpop.xlane.xlu0 %121
    %v123 = vsel %vm28, %v70, 0.0
    %124 = vadd.xlane.f32.xlu0 %v123
    %v125 = vpop.xlane.xlu0 %124
    %v126 = vsel %vm28, %v72, 0.0
    %127 = vadd.xlane.f32.xlu0 %v126
    %v128 = vpop.xlane.xlu0 %127
    %v129 = vsel %vm28, %v74, 0.0
    %130 = vadd.xlane.f32.xlu0 %v129
    %v131 = vpop.xlane.xlu0 %130
    %v132 = vsel %vm28, %v76, 0.0
    %133 = vadd.xlane.f32.xlu0 %v132
    %v134 = vpop.xlane.xlu0 %133
    %v135 = vsel %vm103, %v62, 0.0
    %v136 = vsel %vm104, %v64, 0.0
    %v137 = vsel %vm105, %v66, 0.0
    %v138 = vsel %vm106, %v68, 0.0
    %v139 = vsel %vm107, %v70, 0.0
    %v140 = vsel %vm108, %v72, 0.0
    %v141 = vsel %vm109, %v74, 0.0
    %v142 = vsel %vm110, %v76, 0.0
    %v143 = vsel %vm28, %v135, 0.0
    %144 = vadd.xlane.f32.xlu0 %v143
    %v145 = vpop.xlane.xlu0 %144
    %v146 = vsel %vm28, %v136, 0.0
    %147 = vadd.xlane.f32.xlu0 %v146
    %v148 = vpop.xlane.xlu0 %147
    %v149 = vsel %vm28, %v137, 0.0
    %150 = vadd.xlane.f32.xlu0 %v149
    %v151 = vpop.xlane.xlu0 %150
    %v152 = vsel %vm28, %v138, 0.0
    %153 = vadd.xlane.f32.xlu0 %v152
    %v154 = vpop.xlane.xlu0 %153
    %v155 = vsel %vm28, %v139, 0.0
    %156 = vadd.xlane.f32.xlu0 %v155
    %v157 = vpop.xlane.xlu0 %156
    %v158 = vsel %vm28, %v140, 0.0
    %159 = vadd.xlane.f32.xlu0 %v158
    %v160 = vpop.xlane.xlu0 %159
    %v161 = vsel %vm28, %v141, 0.0
    %162 = vadd.xlane.f32.xlu0 %v161
    %v163 = vpop.xlane.xlu0 %162
    %v164 = vsel %vm28, %v142, 0.0
    %165 = vadd.xlane.f32.xlu0 %v164
    %v166 = vpop.xlane.xlu0 %165
    %v167 = vsel %vm103, %v53, 0.0
    %v168 = vsel %vm104, %v54, 0.0
    %v169 = vsel %vm105, %v55, 0.0
    %v170 = vsel %vm106, %v56, 0.0
    %v171 = vsel %vm107, %v57, 0.0
    %v172 = vsel %vm108, %v58, 0.0
    %v173 = vsel %vm109, %v59, 0.0
    %v174 = vsel %vm110, %v60, 0.0
    %v175 = vsel %vm28, %v167, 0.0
    %176 = vadd.xlane.f32.xlu0 %v175
    %v177 = vpop.xlane.xlu0 %176
    %v178 = vsel %vm28, %v168, 0.0
    %179 = vadd.xlane.f32.xlu0 %v178
    %v180 = vpop.xlane.xlu0 %179
    %v181 = vsel %vm28, %v169, 0.0
    %182 = vadd.xlane.f32.xlu0 %v181
    %v183 = vpop.xlane.xlu0 %182
    %v184 = vsel %vm28, %v170, 0.0
    %185 = vadd.xlane.f32.xlu0 %v184
    %v186 = vpop.xlane.xlu0 %185
    %v187 = vsel %vm28, %v171, 0.0
    %188 = vadd.xlane.f32.xlu0 %v187
    %v189 = vpop.xlane.xlu0 %188
    %v190 = vsel %vm28, %v172, 0.0
    %191 = vadd.xlane.f32.xlu0 %v190
    %v192 = vpop.xlane.xlu0 %191
    %v193 = vsel %vm28, %v173, 0.0
    %194 = vadd.xlane.f32.xlu0 %v193
    %v195 = vpop.xlane.xlu0 %194
    %v196 = vsel %vm28, %v174, 0.0
    %197 = vadd.xlane.f32.xlu0 %v196
    %v198 = vpop.xlane.xlu0 %197
    %v199 = vlog2.pop %v113
    %v200 = vmul.f32 %v199, 0.6931472
    %v201 = vlog2.pop %v116
    %v202 = vmul.f32 %v201, 0.6931472
    %v203 = vlog2.pop %v119
    %v204 = vmul.f32 %v203, 0.6931472
    %v205 = vlog2.pop %v122
    %v206 = vmul.f32 %v205, 0.6931472
    %v207 = vlog2.pop %v125
    %v208 = vmul.f32 %v207, 0.6931472
    %v209 = vlog2.pop %v128
    %v210 = vmul.f32 %v209, 0.6931472
    %v211 = vlog2.pop %v131
    %v212 = vmul.f32 %v211, 0.6931472
    %v213 = vlog2.pop %v134
    %v214 = vmul.f32 %v213, 0.6931472
    %v215 = vsub.f32 %v200, %v177
    %v216 = vsub.f32 %v202, %v180
    %v217 = vsub.f32 %v204, %v183
    %v218 = vsub.f32 %v206, %v186
    %v219 = vsub.f32 %v208, %v189
    %v220 = vsub.f32 %v210, %v192
    %v221 = vsub.f32 %v212, %v195
    %v222 = vsub.f32 %v214, %v198
    %v223 = vmax.f32 %v215, 0.0
    %v224 = vmax.f32 %v216, 0.0
    %v225 = vmax.f32 %v217, 0.0
    %v226 = vmax.f32 %v218, 0.0
    %v227 = vmax.f32 %v219, 0.0
    %v228 = vmax.f32 %v220, 0.0
    %v229 = vmax.f32 %v221, 0.0
    %v230 = vmax.f32 %v222, 0.0
    %v231 = vrcp.pop %v113
    %v232 = vrcp.pop %v116
    %v233 = vrcp.pop %v119
    %v234 = vrcp.pop %v122
    %v235 = vrcp.pop %v125
    %v236 = vrcp.pop %v128
    %v237 = vrcp.pop %v131
    %v238 = vrcp.pop %v134
    %v239 = vmul.f32 %v145, %v231
    %v240 = vmul.f32 %v148, %v232
    %v241 = vmul.f32 %v151, %v233
    %v242 = vmul.f32 %v154, %v234
    %v243 = vmul.f32 %v157, %v235
    %v244 = vmul.f32 %v160, %v236
    %v245 = vmul.f32 %v163, %v237
    %v246 = vmul.f32 %v166, %v238
    %v247 = vsub.f32 1.0, %v239
    %v248 = vsub.f32 1.0, %v240
    %v249 = vsub.f32 1.0, %v241
    %v250 = vsub.f32 1.0, %v242
    %v251 = vsub.f32 1.0, %v243
    %v252 = vsub.f32 1.0, %v244
    %v253 = vsub.f32 1.0, %v245
    %v254 = vsub.f32 1.0, %v246
    %v255 = vmax.f32 %v247, 0.0
    %v256 = vmax.f32 %v248, 0.0
    %v257 = vmax.f32 %v249, 0.0
    %v258 = vmax.f32 %v250, 0.0
    %v259 = vmax.f32 %v251, 0.0
    %v260 = vmax.f32 %v252, 0.0
    %v261 = vmax.f32 %v253, 0.0
    %v262 = vmax.f32 %v254, 0.0
    %v263 = vmul.f32 %v255, %v223
    %v264 = vmul.f32 %v256, %v224
    %v265 = vmul.f32 %v257, %v225
    %v266 = vmul.f32 %v258, %v226
    %v267 = vmul.f32 %v259, %v227
    %v268 = vmul.f32 %v260, %v228
    %v269 = vmul.f32 %v261, %v229
    %v270 = vmul.f32 %v262, %v230
    %s271 = smul.u32 0, 64
    %v272 = vlaneseq
    %v273 = vshrl.u32 %v272, 7
    %v274 = vadd.s32 %v273, 8
    %v275 = vadd.s32 %v273, 16
    %v276 = vadd.s32 %v273, 24
    %v277 = vadd.s32 %v273, 32
    %v278 = vadd.s32 %v273, 40
    %v279 = vadd.s32 %v273, 48
    %v280 = vadd.s32 %v273, 56
    %v281 = vstv %s271
    %v282 = vadd.s32 %v281, %v273
    %v283 = vadd.s32 %v281, %v274
    %v284 = vadd.s32 %v281, %v275
    %v285 = vadd.s32 %v281, %v276
    %v286 = vadd.s32 %v281, %v277
    %v287 = vadd.s32 %v281, %v278
    %v288 = vadd.s32 %v281, %v279
    %v289 = vadd.s32 %v281, %v280
    %vm290 = vcmp.lt.s32.totalorder %v282, 64
    %vm291 = vcmp.lt.s32.totalorder %v283, 64
    %vm292 = vcmp.lt.s32.totalorder %v284, 64
    %vm293 = vcmp.lt.s32.totalorder %v285, 64
    %vm294 = vcmp.lt.s32.totalorder %v286, 64
    %vm295 = vcmp.lt.s32.totalorder %v287, 64
    %vm296 = vcmp.lt.s32.totalorder %v288, 64
    %vm297 = vcmp.lt.s32.totalorder %v289, 64
    %v298 = vsel %vm290, %v263, 0.0
    %v299 = vsel %vm291, %v264, 0.0
    %v300 = vsel %vm292, %v265, 0.0
    %v301 = vsel %vm293, %v266, 0.0
    %v302 = vsel %vm294, %v267, 0.0
    %v303 = vsel %vm295, %v268, 0.0
    %v304 = vsel %vm296, %v269, 0.0
    %v305 = vsel %vm297, %v270, 0.0
    %vm306 = vcmask 7168
    %v307 = vsel %vm306, %v298, 0.0
    %v308 = vsel %vm306, %v299, 0.0
    %v309 = vadd.f32 %v307, %v308
    %v310 = vsel %vm306, %v300, 0.0
    %v311 = vadd.f32 %v309, %v310
    %v312 = vsel %vm306, %v301, 0.0
    %v313 = vadd.f32 %v311, %v312
    %v314 = vsel %vm306, %v302, 0.0
    %v315 = vadd.f32 %v313, %v314
    %v316 = vsel %vm306, %v303, 0.0
    %v317 = vadd.f32 %v315, %v316
    %v318 = vsel %vm306, %v304, 0.0
    %v319 = vadd.f32 %v317, %v318
    %v320 = vsel %vm306, %v305, 0.0
    %v321 = vadd.f32 %v319, %v320
    %322 = vadd.xlane.f32.xlu0 %v321
    %v323 = vpop.xlane.xlu0 %322
    %v324 = vrot.slane %v323, 4
    %v325 = vadd.f32 %v323, %v324
    %v326 = vrot.slane %v325, 2
    %v327 = vadd.f32 %v325, %v326
    %v328 = vrot.slane %v327, 1
    %v329 = vadd.f32 %v327, %v328
    %s330 = vtos %v329
    %s331 = scalar_lea.smem [#allocation2], 0
    %332 = sst [smem:[%s331]] %s330
    // Predicated region
    $region10: #{tpu_custom_call.1} parent=1 // pred_check
      _
    $region11: #{tpu_custom_call.1} parent=1 // pred_check_branch
      %334 = sbr.rel (0) target = $region13
    $region12: #{tpu_custom_call.1} parent=1 // pred_region
      %s336 = ssub.s32 16, 16
      %337 = vsyncadd [#allocation3], %s336
      %340 = dma.smem_to_hbm [#allocation2], 16, %s2, [#allocation3]
    $region13: #{tpu_custom_call.1} parent=1 // pred_fallthru
      _
    // Predicated region
    $region14: #{tpu_custom_call.1} parent=1 // pred_check
      _
    $region15: #{tpu_custom_call.1} parent=1 // pred_check_branch
      %342 = sbr.rel (0) target = $region17
    $region16: #{tpu_custom_call.1} parent=1 // pred_region
      %343 = dma.done [#allocation3], 16
    $region17: #{tpu_custom_call.1} parent=1 // pred_fallthru
      _
    %344 = sfence
    %345 = vsyncpa [#allocation3], 1

</llo_original>
